<compile_context>
chip_gen: v7x
topology: tpu7x:2x2x1
jax: 0.10.0
libtpu: 0.0.40
codegen_flags: <defaults>
</compile_context>

<pallas_src>
import functools

import jax
import jax.numpy as jnp
from jax.experimental import pallas as pl
from jax.experimental.pallas import tpu as pltpu

NUM_EXPERTS = 4


# ----------------------------- Pallas kernel ------------------------------ #
def moe_kernel(x_ref, w1_ref, w2_ref, w3_ref, b_ref, out_ref, *, a_dim):
    """One batch tile of the fused MOE forward pass.

    x_ref  : [TB, s_dim]        (dtype matches the weight slabs)
    w1_ref : [s_dim, n1]        n1 = hg1 + E*he1   (normalizers folded in)
    w2_ref : [n1, n2]           n2 = hg2 + E*he2   (block-diagonal)
    w3_ref : [n2, n3]           n3 = E + E*a_dim   (block-diag, scale folded)
    b_ref  : [3, max(n1,n2,n3)] f32 biases, rows zero padded
    out_ref: [TB, a_dim]        f32
    """
    wdt = w1_ref.dtype
    n1 = w1_ref.shape[1]
    n2 = w2_ref.shape[1]
    n3 = w3_ref.shape[1]

    x = x_ref[...].astype(wdt)

    # Three wide lane-dense matmuls (gating + all experts fused).  Matmul
    # operands may be bf16; accumulation and all elementwise math stay f32.
    h1 = jnp.tanh(
        jnp.dot(x, w1_ref[...], preferred_element_type=jnp.float32)
        + b_ref[0:1, :n1])
    h2 = jnp.tanh(
        jnp.dot(h1.astype(wdt), w2_ref[...], preferred_element_type=jnp.float32)
        + b_ref[1:2, :n2])
    z = (jnp.dot(h2.astype(wdt), w3_ref[...], preferred_element_type=jnp.float32)
         + b_ref[2:3, :n3])                              # [TB, E + E*a_dim]

    # Gating softmax over the first E lanes of z.
    logits = z[:, :NUM_EXPERTS]
    logits = logits - jnp.max(logits, axis=-1, keepdims=True)
    p = jnp.exp(logits)
    inv = pl.reciprocal(jnp.sum(p, axis=-1, keepdims=True), approx=False)
    gate = p * inv                                       # [TB, E]

    # Gate-weighted reduction of the stacked per-expert actions.
    a_all = z[:, NUM_EXPERTS:]                           # [TB, E*a_dim]
    acc = a_all[:, 0:a_dim] * gate[:, 0:1]
    for e in range(1, NUM_EXPERTS):
        acc = acc + a_all[:, e * a_dim:(e + 1) * a_dim] * gate[:, e:e + 1]
    # TODO(synk): for very large B, emit the output transposed ([a_dim, B],
    # batch on lanes) to avoid 8/128 masked stores; kept [TB, a_dim] here.
    out_ref[...] = acc.astype(out_ref.dtype)


# ------------------------ weight folding / packing ------------------------ #
def pack_params(p, compute_dtype=jnp.float32):
    """Fold normalizers + scale into weights and fuse gating/experts into
    3 wide weight slabs + 1 bias slab."""
    E = NUM_EXPERTS
    g_mean, g_std = p["g_mean"], p["g_std"]              # [1, s_dim]
    s_dim = g_mean.shape[-1]
    s_sub = p["e_mean"].shape[-1]
    hg1 = p["gW1"].shape[-1]
    hg2 = p["gW2"].shape[-1]
    he1 = p["eW1"].shape[-1]
    he2 = p["eW2"].shape[-1]
    a_dim = p["eWa"].shape[-1]

    # Fold (x - mean)/std into layer-1 weights:  W' = W/std[:,None],
    # b' = b - (mean/std) @ W.
    inv_gstd = 1.0 / g_std
    gW1f = p["gW1"] * inv_gstd.reshape(s_dim, 1)
    gb1f = p["gb1"] - (g_mean * inv_gstd) @ p["gW1"]      # [1, hg1]

    inv_estd = 1.0 / p["e_std"]                           # [E, s_sub]
    eW1f = p["eW1"] * inv_estd[:, :, None]                # [E, s_sub, he1]
    eb1f = p["eb1"] - jnp.einsum("es,esh->eh",
                                 p["e_mean"] * inv_estd, p["eW1"])

    # Fold the action scale into the expert output layer.
    eWaf = p["eWa"] * p["scale"][:, None, :]              # [E, he2, a_dim]
    ebaf = p["eba"] * p["scale"]                          # [E, a_dim]

    n1 = hg1 + E * he1
    n2 = hg2 + E * he2
    n3 = E + E * a_dim

    # Layer 1: gating cols first, then each expert; expert rows past s_sub = 0
    # so the experts effectively see x[:, :s_sub].
    W1 = jnp.zeros((s_dim, n1), jnp.float32)
    W1 = W1.at[:, :hg1].set(gW1f)
    for e in range(E):
        W1 = W1.at[:s_sub, hg1 + e * he1: hg1 + (e + 1) * he1].set(eW1f[e])
    b1 = jnp.concatenate([gb1f, eb1f.reshape(1, E * he1)], axis=-1)

    # Layer 2: block-diagonal (gating block + 4 expert blocks).
    W2 = jnp.zeros((n1, n2), jnp.float32)
    W2 = W2.at[:hg1, :hg2].set(p["gW2"])
    for e in range(E):
        W2 = W2.at[hg1 + e * he1: hg1 + (e + 1) * he1,
                   hg2 + e * he2: hg2 + (e + 1) * he2].set(p["eW2"][e])
    b2 = jnp.concatenate([p["gb2"], p["eb2"].reshape(1, E * he2)], axis=-1)

    # Layer 3: gating logits (E lanes) followed by E*a_dim scaled actions.
    W3 = jnp.zeros((n2, n3), jnp.float32)
    W3 = W3.at[:hg2, :E].set(p["gWa"])
    for e in range(E):
        W3 = W3.at[hg2 + e * he2: hg2 + (e + 1) * he2,
                   E + e * a_dim: E + (e + 1) * a_dim].set(eWaf[e])
    b3 = jnp.concatenate([p["gba"], ebaf.reshape(1, E * a_dim)], axis=-1)

    nmax = max(n1, n2, n3)
    bias = jnp.zeros((3, nmax), jnp.float32)
    bias = bias.at[0, :n1].set(b1[0])
    bias = bias.at[1, :n2].set(b2[0])
    bias = bias.at[2, :n3].set(b3[0])

    return (W1.astype(compute_dtype), W2.astype(compute_dtype),
            W3.astype(compute_dtype), bias)


# ----------------------------- wrapper ------------------------------------ #
def moe_forward(x, packed, *, tile_b=256):
    w1, w2, w3, bias = packed
    B, s_dim = x.shape
    assert w1.shape[0] == s_dim
    a_dim = (w3.shape[1] - NUM_EXPERTS) // NUM_EXPERTS

    tile_b = min(tile_b, B)
    assert B % tile_b == 0, "batch must be divisible by tile_b"

    # Match the weight compute dtype (bf16 path halves HBM traffic for x,
    # the only B-scaled input).
    x = x.astype(w1.dtype)

    kernel = functools.partial(moe_kernel, a_dim=a_dim)

    def const_spec(arr):
        return pl.BlockSpec(arr.shape, lambda i: (0, 0))

    return pl.pallas_call(
        kernel,
        out_shape=jax.ShapeDtypeStruct((B, a_dim), jnp.float32),
        grid=(B // tile_b,),
        in_specs=[pl.BlockSpec((tile_b, s_dim), lambda i: (i, 0)),
                  const_spec(w1), const_spec(w2), const_spec(w3),
                  const_spec(bias)],
        out_specs=pl.BlockSpec((tile_b, a_dim), lambda i: (i, 0)),
        compiler_params=pltpu.CompilerParams(
            dimension_semantics=("parallel",)),
    )(x, w1, w2, w3, bias)


# ----------------------- deterministic parameter init --------------------- #
def orthogonal(key, out_dim, in_dim, gain=1.0):
    """Mimics torch.nn.init.orthogonal_ on a (out_dim, in_dim) weight."""
    a = jax.random.normal(key, (out_dim, in_dim), dtype=jnp.float32)
    transpose = out_dim < in_dim
    if transpose:
        a = a.T
    q, r = jnp.linalg.qr(a)
    q = q * jnp.sign(jnp.diag(r))[None, :]
    if transpose:
        q = q.T
    return gain * q


def make_params(key, s_dim, a_dim, hidden_gating, hidden_expert,
                a_low, a_high):
    s_sub = s_dim - 20
    hg1, hg2 = hidden_gating
    he1, he2 = hidden_expert
    keys = jax.random.split(key, 3 + 3 * NUM_EXPERTS + 4)

    p = {}
    # Non-trivial normalizer statistics (as if loaded from a checkpoint) so
    # the weight folding is actually exercised by the test.
    kgm, kgs, kem, kes = keys[-4:]
    p["g_mean"] = 0.3 * jax.random.normal(kgm, (1, s_dim), jnp.float32)
    p["g_std"] = 0.8 + 0.4 * jax.random.uniform(kgs, (1, s_dim), jnp.float32)
    p["e_mean"] = 0.3 * jax.random.normal(kem, (NUM_EXPERTS, s_sub), jnp.float32)
    p["e_std"] = 0.8 + 0.4 * jax.random.uniform(kes, (NUM_EXPERTS, s_sub),
                                                jnp.float32)

    # Gating: Linear(s_dim->hg1), Linear(hg1->hg2), Linear(hg2->4); biases = 0.
    p["gW1"] = orthogonal(keys[0], hg1, s_dim).T
    p["gb1"] = jnp.zeros((1, hg1), jnp.float32)
    p["gW2"] = orthogonal(keys[1], hg2, hg1).T
    p["gb2"] = jnp.zeros((1, hg2), jnp.float32)
    p["gWa"] = orthogonal(keys[2], NUM_EXPERTS, hg2).T
    p["gba"] = jnp.zeros((1, NUM_EXPERTS), jnp.float32)

    # Experts: Linear(s_sub->he1), Linear(he1->he2), Linear(he2->a_dim, gain 1e-3).
    eW1, eW2, eWa = [], [], []
    for e in range(NUM_EXPERTS):
        k1, k2, k3 = keys[3 + 3 * e: 6 + 3 * e]
        eW1.append(orthogonal(k1, he1, s_sub).T)
        eW2.append(orthogonal(k2, he2, he1).T)
        eWa.append(orthogonal(k3, a_dim, he2, gain=0.001).T)
    p["eW1"] = jnp.stack(eW1)                      # [4, s_sub, he1]
    p["eb1"] = jnp.zeros((NUM_EXPERTS, he1), jnp.float32)
    p["eW2"] = jnp.stack(eW2)                      # [4, he1, he2]
    p["eb2"] = jnp.zeros((NUM_EXPERTS, he2), jnp.float32)
    p["eWa"] = jnp.stack(eWa)                      # [4, he2, a_dim]
    p["eba"] = jnp.zeros((NUM_EXPERTS, a_dim), jnp.float32)

    scale = (a_high - a_low) / 2.0                 # Actor.scale (shared bound)
    p["scale"] = jnp.tile(scale[None, :], (NUM_EXPERTS, 1))   # [4, a_dim]
    return p


# ----------------------------- pure-JAX reference -------------------------- #
def moe_ref(x, p):
    s_sub = p["e_mean"].shape[-1]
    xg = (x - p["g_mean"]) / p["g_std"]
    h = jnp.tanh(xg @ p["gW1"] + p["gb1"])
    h = jnp.tanh(h @ p["gW2"] + p["gb2"])
    gate = jax.nn.softmax(h @ p["gWa"] + p["gba"], axis=-1)    # [B, 4]
    x_sub = x[:, :s_sub]
    out = 0.0
    for e in range(NUM_EXPERTS):
        xe = (x_sub - p["e_mean"][e]) / p["e_std"][e]
        he = jnp.tanh(xe @ p["eW1"][e] + p["eb1"][e])
        he = jnp.tanh(he @ p["eW2"][e] + p["eb2"][e])
        a = (he @ p["eWa"][e] + p["eba"][e]) * p["scale"][e]
        out = out + a * gate[:, e:e + 1]
    return out


if __name__ == "__main__":
    B = 16
    S_DIM = 52                 # gating input dim; experts see S_DIM - 20 = 32
    A_DIM = 8
    HIDDEN_GATING = [32, 32]
    HIDDEN_EXPERT = [32, 32]

    key = jax.random.PRNGKey(0)
    k_x, k_x2, k_p = jax.random.split(key, 3)
    a_low = -2.0 * jnp.ones((A_DIM,), jnp.float32)
    a_high = 2.0 * jnp.ones((A_DIM,), jnp.float32)
    params = make_params(k_p, S_DIM, A_DIM, HIDDEN_GATING, HIDDEN_EXPERT,
                         a_low, a_high)
    packed = pack_params(params)                       # f32 fused slabs

    # --- small batch, 2 parallel grid steps (keeps both v7x TCs busy) ------
    x = jax.random.normal(k_x, (B, S_DIM), dtype=jnp.float32)
    out = jax.block_until_ready(moe_forward(x, packed, tile_b=8))
    ref = moe_ref(x, params)
    assert out.shape == (B, A_DIM)
    assert jnp.allclose(out, ref, rtol=1e-3, atol=1e-5), (
        "Pallas MOE output mismatch vs reference (f32, small batch)")

    # --- larger batch with big tiles (the production-shaped path) ----------
    B2 = 512
    x2 = jax.random.normal(k_x2, (B2, S_DIM), dtype=jnp.float32)
    out2 = jax.block_until_ready(moe_forward(x2, packed, tile_b=256))
    ref2 = moe_ref(x2, params)
    assert jnp.allclose(out2, ref2, rtol=1e-3, atol=1e-5), (
        "Pallas MOE output mismatch vs reference (f32, large batch)")

    # --- bf16 matmul operands (v6e/v7x MXU path), f32 accumulation ---------
    packed_bf16 = pack_params(params, compute_dtype=jnp.bfloat16)
    out3 = jax.block_until_ready(moe_forward(x2, packed_bf16, tile_b=256))
    assert jnp.allclose(out3, ref2, rtol=5e-2, atol=1e-3), (
        "Pallas MOE output mismatch vs reference (bf16 matmul path)")

    print("KERNEL_OK")
</pallas_src>

<mosaic_0001>
module attributes {stable_mosaic.version = 11 : i64} {
  func.func @moe_kernel(%arg0: i32, %arg1: memref<8x52xf32, #tpu.memory_space<vmem>>, %arg2: memref<52x160xf32, #tpu.memory_space<vmem>>, %arg3: memref<160x160xf32, #tpu.memory_space<vmem>>, %arg4: memref<160x36xf32, #tpu.memory_space<vmem>>, %arg5: memref<3x160xf32, #tpu.memory_space<vmem>>, %arg6: memref<8x8xf32, #tpu.memory_space<vmem>>) attributes {dimension_semantics = [#tpu.dimension_semantics<parallel>], iteration_bounds = array<i64: 2>, scalar_prefetch = 0 : i64, scratch_operands = 0 : i64, tpu.core_type = #tpu.core_type<tc>, window_params = [{transform_indices = @transform_0, window_bounds = array<i64: 8, 52>}, {pipeline_mode = #tpu.pipeline_mode<synchronous>, transform_indices = @transform_1, window_bounds = array<i64: 52, 160>}, {pipeline_mode = #tpu.pipeline_mode<synchronous>, transform_indices = @transform_2, window_bounds = array<i64: 160, 160>}, {pipeline_mode = #tpu.pipeline_mode<synchronous>, transform_indices = @transform_3, window_bounds = array<i64: 160, 36>}, {pipeline_mode = #tpu.pipeline_mode<synchronous>, transform_indices = @transform_4, window_bounds = array<i64: 3, 160>}, {transform_indices = @transform_5, window_bounds = array<i64: 8, 8>}]} {
    %c0 = arith.constant 0 : index
    %c0_0 = arith.constant 0 : index
    %0 = vector.load %arg1[%c0, %c0_0] : memref<8x52xf32, #tpu.memory_space<vmem>>, vector<8x52xf32>
    %c0_1 = arith.constant 0 : index
    %c0_2 = arith.constant 0 : index
    %1 = vector.load %arg2[%c0_1, %c0_2] : memref<52x160xf32, #tpu.memory_space<vmem>>, vector<52x160xf32>
    %cst = arith.constant dense<0.000000e+00> : vector<8x160xf32>
    %2 = tpu.matmul %0, %1, %cst {dimension_numbers = #tpu.dot_dimension_numbers<[1], [0], [0], [1], [0, 0, 1, 1], [], []>} : vector<8x52xf32>, vector<52x160xf32>, vector<8x160xf32> -> vector<8x160xf32>
    %c0_3 = arith.constant 0 : index
    %c0_4 = arith.constant 0 : index
    %3 = vector.load %arg5[%c0_3, %c0_4] : memref<3x160xf32, #tpu.memory_space<vmem>>, vector<1x160xf32>
    %4 = vector.broadcast %3 : vector<1x160xf32> to vector<8x160xf32>
    %5 = arith.addf %2, %4 : vector<8x160xf32>
    %6 = math.tanh %5 : vector<8x160xf32>
    %c0_5 = arith.constant 0 : index
    %c0_6 = arith.constant 0 : index
    %7 = vector.load %arg3[%c0_5, %c0_6] : memref<160x160xf32, #tpu.memory_space<vmem>>, vector<160x160xf32>
    %cst_7 = arith.constant dense<0.000000e+00> : vector<8x160xf32>
    %8 = tpu.matmul %6, %7, %cst_7 {dimension_numbers = #tpu.dot_dimension_numbers<[1], [0], [0], [1], [0, 0, 1, 1], [], []>} : vector<8x160xf32>, vector<160x160xf32>, vector<8x160xf32> -> vector<8x160xf32>
    %c1 = arith.constant 1 : index
    %c0_8 = arith.constant 0 : index
    %9 = vector.load %arg5[%c1, %c0_8] : memref<3x160xf32, #tpu.memory_space<vmem>>, vector<1x160xf32>
    %10 = vector.broadcast %9 : vector<1x160xf32> to vector<8x160xf32>
    %11 = arith.addf %8, %10 : vector<8x160xf32>
    %12 = math.tanh %11 : vector<8x160xf32>
    %c0_9 = arith.constant 0 : index
    %c0_10 = arith.constant 0 : index
    %13 = vector.load %arg4[%c0_9, %c0_10] : memref<160x36xf32, #tpu.memory_space<vmem>>, vector<160x36xf32>
    %cst_11 = arith.constant dense<0.000000e+00> : vector<8x36xf32>
    %14 = tpu.matmul %12, %13, %cst_11 {dimension_numbers = #tpu.dot_dimension_numbers<[1], [0], [0], [1], [0, 0, 1, 1], [], []>} : vector<8x160xf32>, vector<160x36xf32>, vector<8x36xf32> -> vector<8x36xf32>
    %c2 = arith.constant 2 : index
    %c0_12 = arith.constant 0 : index
    %15 = vector.load %arg5[%c2, %c0_12] : memref<3x160xf32, #tpu.memory_space<vmem>>, vector<1x36xf32>
    %16 = vector.broadcast %15 : vector<1x36xf32> to vector<8x36xf32>
    %17 = arith.addf %14, %16 : vector<8x36xf32>
    %18 = vector.extract_strided_slice %17 {offsets = [0, 0], sizes = [8, 4], strides = [1, 1]} : vector<8x36xf32> to vector<8x4xf32>
    %cst_13 = arith.constant dense<0xFF800000> : vector<8xf32>
    %19 = vector.multi_reduction <maximumf>, %18, %cst_13 [1] : vector<8x4xf32> to vector<8xf32>
    %20 = vector.shape_cast %19 : vector<8xf32> to vector<8x1xf32>
    %21 = vector.broadcast %20 : vector<8x1xf32> to vector<8x4xf32>
    %22 = arith.subf %18, %21 : vector<8x4xf32>
    %23 = math.exp %22 : vector<8x4xf32>
    %cst_14 = arith.constant dense<0.000000e+00> : vector<8xf32>
    %24 = vector.multi_reduction <add>, %23, %cst_14 [1] : vector<8x4xf32> to vector<8xf32>
    %25 = vector.shape_cast %24 : vector<8xf32> to vector<8x1xf32>
    %26 = tpu.reciprocal %25 : vector<8x1xf32> -> vector<8x1xf32>
    %27 = vector.broadcast %26 : vector<8x1xf32> to vector<8x4xf32>
    %28 = arith.mulf %23, %27 : vector<8x4xf32>
    %29 = vector.extract_strided_slice %17 {offsets = [0, 4], sizes = [8, 32], strides = [1, 1]} : vector<8x36xf32> to vector<8x32xf32>
    %30 = vector.extract_strided_slice %29 {offsets = [0, 0], sizes = [8, 8], strides = [1, 1]} : vector<8x32xf32> to vector<8x8xf32>
    %31 = vector.extract_strided_slice %28 {offsets = [0, 0], sizes = [8, 1], strides = [1, 1]} : vector<8x4xf32> to vector<8x1xf32>
    %32 = vector.broadcast %31 : vector<8x1xf32> to vector<8x8xf32>
    %33 = arith.mulf %30, %32 : vector<8x8xf32>
    %34 = vector.extract_strided_slice %29 {offsets = [0, 8], sizes = [8, 8], strides = [1, 1]} : vector<8x32xf32> to vector<8x8xf32>
    %35 = vector.extract_strided_slice %28 {offsets = [0, 1], sizes = [8, 1], strides = [1, 1]} : vector<8x4xf32> to vector<8x1xf32>
    %36 = vector.broadcast %35 : vector<8x1xf32> to vector<8x8xf32>
    %37 = arith.mulf %34, %36 : vector<8x8xf32>
    %38 = arith.addf %33, %37 : vector<8x8xf32>
    %39 = vector.extract_strided_slice %29 {offsets = [0, 16], sizes = [8, 8], strides = [1, 1]} : vector<8x32xf32> to vector<8x8xf32>
    %40 = vector.extract_strided_slice %28 {offsets = [0, 2], sizes = [8, 1], strides = [1, 1]} : vector<8x4xf32> to vector<8x1xf32>
    %41 = vector.broadcast %40 : vector<8x1xf32> to vector<8x8xf32>
    %42 = arith.mulf %39, %41 : vector<8x8xf32>
    %43 = arith.addf %38, %42 : vector<8x8xf32>
    %44 = vector.extract_strided_slice %29 {offsets = [0, 24], sizes = [8, 8], strides = [1, 1]} : vector<8x32xf32> to vector<8x8xf32>
    %45 = vector.extract_strided_slice %28 {offsets = [0, 3], sizes = [8, 1], strides = [1, 1]} : vector<8x4xf32> to vector<8x1xf32>
    %46 = vector.broadcast %45 : vector<8x1xf32> to vector<8x8xf32>
    %47 = arith.mulf %44, %46 : vector<8x8xf32>
    %48 = arith.addf %43, %47 : vector<8x8xf32>
    %c0_15 = arith.constant 0 : index
    %c0_16 = arith.constant 0 : index
    %49 = vector.load %arg6[%c0_15, %c0_16] : memref<8x8xf32, #tpu.memory_space<vmem>>, vector<8x8xf32>
    tpu.vector_store %arg6[%c0_15, %c0_16], %48 {strides = array<i32>} : memref<8x8xf32, #tpu.memory_space<vmem>>, vector<8x8xf32>,
    return
  }
  func.func @transform_0(%arg0: i32) -> (i32, i32) {
    %c0_i32 = arith.constant 0 : i32
    %c0_i32_0 = arith.constant 0 : i32
    return %arg0, %c0_i32 : i32, i32
  }
  func.func @transform_1(%arg0: i32) -> (i32, i32) {
    %c0_i32 = arith.constant 0 : i32
    %c0_i32_0 = arith.constant 0 : i32
    %c0_i32_1 = arith.constant 0 : i32
    return %c0_i32, %c0_i32_0 : i32, i32
  }
  func.func @transform_2(%arg0: i32) -> (i32, i32) {
    %c0_i32 = arith.constant 0 : i32
    %c0_i32_0 = arith.constant 0 : i32
    %c0_i32_1 = arith.constant 0 : i32
    return %c0_i32, %c0_i32_0 : i32, i32
  }
  func.func @transform_3(%arg0: i32) -> (i32, i32) {
    %c0_i32 = arith.constant 0 : i32
    %c0_i32_0 = arith.constant 0 : i32
    %c0_i32_1 = arith.constant 0 : i32
    return %c0_i32, %c0_i32_0 : i32, i32
  }
  func.func @transform_4(%arg0: i32) -> (i32, i32) {
    %c0_i32 = arith.constant 0 : i32
    %c0_i32_0 = arith.constant 0 : i32
    %c0_i32_1 = arith.constant 0 : i32
    return %c0_i32, %c0_i32_0 : i32, i32
  }
  func.func @transform_5(%arg0: i32) -> (i32, i32) {
    %c0_i32 = arith.constant 0 : i32
    %c0_i32_0 = arith.constant 0 : i32
    return %arg0, %c0_i32 : i32, i32
  }
}

</mosaic_0001>

<llo_original>
// kernel: tpu_custom_call.1
$region0: #{tpu_custom_call.1}
  #allocation0 [shape = 'u32[]', space=smem, size = 0x4, offset = 0x4, fixed_abs, tag = 'smem constant byte address 0x4 - core index']
  #allocation1 [shape = 'u32[144,128]{1,0:T(1,128)}', space=vmem, size = 0x12000, scoped, tag = 'internal scratch']
  %s0 = inlined_call_operand.vmem [shape: f32[16,52], index: 0, kind: input, shape index: {}]
  %s1 = inlined_call_operand.vmem [shape: f32[52,160], index: 1, kind: input, shape index: {}]
  %s2 = inlined_call_operand.hbm [shape: f32[160,160], index: 2, kind: input, shape index: {}]
  %s3 = inlined_call_operand.vmem [shape: f32[160,36], index: 3, kind: input, shape index: {}]
  %s4 = inlined_call_operand.vmem [shape: f32[3,160], index: 4, kind: input, shape index: {}]
  %s5 = inlined_call_operand.vmem [shape: f32[16,8], index: 5, kind: output, shape index: {}]
  %s6 = sld [smem:[#allocation0]]
  $region57: #{tpu_custom_call.1} parent=0
    _
  %s8 = ssub.s32 1, %s6
  %s9 = scalar_select 0, %s8, %s6
  $region1: #{tpu_custom_call.1} parent=0
    #allocation2 [shape = 'u8[163840]{0}', space=vmem, size = 0x28000, scoped, tag = 'input window, operand 2, single buffered']
    #allocation3 [shape = 's32[2]{0}', space=sflag, size = 0x8, scoped, tag = 'scoped memory for tpu_custom_call.1']
    %10 = vsyncpa [#allocation3], 0
    loop: start=0, step=1, limit=4
    $region2: #{tpu_custom_call.1} parent=1 // loop_pre_header
      _
    $region3: #{tpu_custom_call.1} parent=1 // loop_header
      %s12 = sphi 0, %s16
      %p13 = scmp.ge.s32.totalorder %s12, 4
      %s22 = sphi 0, %s24
      %s25 = sphi 0, %s22
      %s26 = sphi 0, %s25
      %s42 = sphi 0, %s26
      %s46 = sphi 0, %s46
      %s48 = sphi 0, %s46
      %s49 = sphi 0, %s48
      %s63 = sphi 0, %s49
      %s67 = sphi 0, %s67
      %s69 = sphi 0, %s67
      %s70 = sphi 0, %s69
      %s84 = sphi 0, %s70
      %s88 = sphi 0, %s88
      %s90 = sphi 0, %s88
      %s91 = sphi 0, %s90
      %s105 = sphi 0, %s91
      %s109 = sphi 0, %s109
      %s111 = sphi 0, %s109
      %s112 = sphi 0, %s111
      %s126 = sphi 0, %s112
      %s132 = sphi 0, %s134
      %s135 = sphi 0, %s132
      %s136 = sphi 0, %s135
      %s152 = sphi 0, %s136
    $region4: #{tpu_custom_call.1} parent=1 // loop_header_branch
      %15 = sbr.rel (%p13) target = $region8
    $region5: #{tpu_custom_call.1} parent=1 // loop_body
      %s17 = ssub.s32 %s12, 1
      %s18 = ssub.s32 %s12, 2
      %s19 = sadd.s32 %s12, 1
      %s20 = ssub.s32 %s12, %s19
      %p21 = scmp.eq.s32.totalorder %s20, 0
      %s23 = sadd.s32 %s22, 1
      %s24 = scalar_select %p21, %s22, %s23
      %p27 = pneg %p21
      %p28 = scmp.eq.s32.totalorder %s12, 1
      %p29 = por %p27, %p28
      %p30 = scmp.ne.s32.totalorder %s22, %s25
      %p31 = scmp.eq.s32.totalorder %s12, 0
      %p32 = por %p30, %p31
      %p33 = scmp.ne.s32.totalorder %s22, %s25
      %p34 = scmp.eq.s32.totalorder %s17, 1
      %p35 = por %p33, %p34
      %p36 = scmp.ne.s32.totalorder %s25, %s26
      %p37 = scmp.eq.s32.totalorder %s17, 0
      %p38 = por %p36, %p37
      %p39 = scmp.ne.s32.totalorder %s25, %s26
      %p40 = scmp.eq.s32.totalorder %s18, 1
      %p41 = por %p39, %p40
      %p43 = scmp.ne.s32.totalorder %s26, %s42
      %p44 = scmp.eq.s32.totalorder %s18, 0
      %p45 = por %p43, %p44
      %s47 = sadd.s32 %s46, 1
      %p50 = scmp.eq.s32.totalorder %s12, 1
      %p51 = scmp.ne.s32.totalorder %s46, %s48
      %p52 = scmp.eq.s32.totalorder %s12, 0
      %p53 = por %p51, %p52
      %p54 = scmp.ne.s32.totalorder %s46, %s48
      %p55 = scmp.eq.s32.totalorder %s17, 1
      %p56 = por %p54, %p55
      %p57 = scmp.ne.s32.totalorder %s48, %s49
      %p58 = scmp.eq.s32.totalorder %s17, 0
      %p59 = por %p57, %p58
      %p60 = scmp.ne.s32.totalorder %s48, %s49
      %p61 = scmp.eq.s32.totalorder %s18, 1
      %p62 = por %p60, %p61
      %p64 = scmp.ne.s32.totalorder %s49, %s63
      %p65 = scmp.eq.s32.totalorder %s18, 0
      %p66 = por %p64, %p65
      %s68 = sadd.s32 %s67, 1
      %p71 = scmp.eq.s32.totalorder %s12, 1
      %p72 = scmp.ne.s32.totalorder %s67, %s69
      %p73 = scmp.eq.s32.totalorder %s12, 0
      %p74 = por %p72, %p73
      %p75 = scmp.ne.s32.totalorder %s67, %s69
      %p76 = scmp.eq.s32.totalorder %s17, 1
      %p77 = por %p75, %p76
      %p78 = scmp.ne.s32.totalorder %s69, %s70
      %p79 = scmp.eq.s32.totalorder %s17, 0
      %p80 = por %p78, %p79
      %p81 = scmp.ne.s32.totalorder %s69, %s70
      %p82 = scmp.eq.s32.totalorder %s18, 1
      %p83 = por %p81, %p82
      %p85 = scmp.ne.s32.totalorder %s70, %s84
      %p86 = scmp.eq.s32.totalorder %s18, 0
      %p87 = por %p85, %p86
      %s89 = sadd.s32 %s88, 1
      %p92 = scmp.eq.s32.totalorder %s12, 1
      %p93 = scmp.ne.s32.totalorder %s88, %s90
      %p94 = scmp.eq.s32.totalorder %s12, 0
      %p95 = por %p93, %p94
      %p96 = scmp.ne.s32.totalorder %s88, %s90
      %p97 = scmp.eq.s32.totalorder %s17, 1
      %p98 = por %p96, %p97
      %p99 = scmp.ne.s32.totalorder %s90, %s91
      %p100 = scmp.eq.s32.totalorder %s17, 0
      %p101 = por %p99, %p100
      %p102 = scmp.ne.s32.totalorder %s90, %s91
      %p103 = scmp.eq.s32.totalorder %s18, 1
      %p104 = por %p102, %p103
      %p106 = scmp.ne.s32.totalorder %s91, %s105
      %p107 = scmp.eq.s32.totalorder %s18, 0
      %p108 = por %p106, %p107
      %s110 = sadd.s32 %s109, 1
      %p113 = scmp.eq.s32.totalorder %s12, 1
      %p114 = scmp.ne.s32.totalorder %s109, %s111
      %p115 = scmp.eq.s32.totalorder %s12, 0
      %p116 = por %p114, %p115
      %p117 = scmp.ne.s32.totalorder %s109, %s111
      %p118 = scmp.eq.s32.totalorder %s17, 1
      %p119 = por %p117, %p118
      %p120 = scmp.ne.s32.totalorder %s111, %s112
      %p121 = scmp.eq.s32.totalorder %s17, 0
      %p122 = por %p120, %p121
      %p123 = scmp.ne.s32.totalorder %s111, %s112
      %p124 = scmp.eq.s32.totalorder %s18, 1
      %p125 = por %p123, %p124
      %p127 = scmp.ne.s32.totalorder %s112, %s126
      %p128 = scmp.eq.s32.totalorder %s18, 0
      %p129 = por %p127, %p128
      %s130 = ssub.s32 %s12, %s19
      %p131 = scmp.eq.s32.totalorder %s130, 0
      %s133 = sadd.s32 %s132, 1
      %s134 = scalar_select %p131, %s132, %s133
      %p137 = pneg %p131
      %p138 = scmp.eq.s32.totalorder %s12, 1
      %p139 = por %p137, %p138
      %p140 = scmp.ne.s32.totalorder %s132, %s135
      %p141 = scmp.eq.s32.totalorder %s12, 0
      %p142 = por %p140, %p141
      %p143 = scmp.ne.s32.totalorder %s132, %s135
      %p144 = scmp.eq.s32.totalorder %s17, 1
      %p145 = por %p143, %p144
      %p146 = scmp.ne.s32.totalorder %s135, %s136
      %p147 = scmp.eq.s32.totalorder %s17, 0
      %p148 = por %p146, %p147
      %p149 = scmp.ne.s32.totalorder %s135, %s136
      %p150 = scmp.eq.s32.totalorder %s18, 1
      %p151 = por %p149, %p150
      %p153 = scmp.ne.s32.totalorder %s136, %s152
      %p154 = scmp.eq.s32.totalorder %s18, 0
      %p155 = por %p153, %p154
      %p156 = scmp.le.s32.totalorder 1, %s12
      %p157 = scmp.lt.s32.totalorder %s12, 3
      %p158 = pnand %p156, %p157
      %p159 = pneg %p158
      // Predicated region
      $region9: #{tpu_custom_call.1} parent=5 // pred_check
        _
      $region10: #{tpu_custom_call.1} parent=5 // pred_check_branch
        %161 = sbr.rel (%p158) target = $region12
      $region11: #{tpu_custom_call.1} parent=5 // pred_region
        %s162 = ssub.s32 %s12, 1
        // Predicated region
        $region13: #{tpu_custom_call.1} parent=11 // pred_check
          %p163 = pneg %p59
        $region14: #{tpu_custom_call.1} parent=11 // pred_check_branch
          %165 = sbr.rel (%p163) target = $region16
        $region15: #{tpu_custom_call.1} parent=11 // pred_region
          _
        $region16: #{tpu_custom_call.1} parent=11 // pred_fallthru
          _
        // Predicated region
        $region17: #{tpu_custom_call.1} parent=11 // pred_check
          %p166 = pneg %p80
        $region18: #{tpu_custom_call.1} parent=11 // pred_check_branch
          %168 = sbr.rel (%p166) target = $region20
        $region19: #{tpu_custom_call.1} parent=11 // pred_region
          %s170 = ssub.s32 5120, 5120
          %171 = vsyncadd [#allocation3], %s170
          %s172 = sshll.u32 [#allocation2], 4
          %s173 = int_to_ptr.vmem [resolvable:$true] %s172
          %178 = dma.hbm_to_vmem [thread:$0]  %s2, 5120, %s173, [#allocation3], 256, 256, 16
        $region20: #{tpu_custom_call.1} parent=11 // pred_fallthru
          _
        // Predicated region
        $region21: #{tpu_custom_call.1} parent=11 // pred_check
          %p179 = pneg %p101
        $region22: #{tpu_custom_call.1} parent=11 // pred_check_branch
          %181 = sbr.rel (%p179) target = $region24
        $region23: #{tpu_custom_call.1} parent=11 // pred_region
          _
        $region24: #{tpu_custom_call.1} parent=11 // pred_fallthru
          _
        // Predicated region
        $region25: #{tpu_custom_call.1} parent=11 // pred_check
          %p182 = pneg %p122
        $region26: #{tpu_custom_call.1} parent=11 // pred_check_branch
          %184 = sbr.rel (%p182) target = $region28
        $region27: #{tpu_custom_call.1} parent=11 // pred_region
          _
        $region28: #{tpu_custom_call.1} parent=11 // pred_fallthru
          _
      $region12: #{tpu_custom_call.1} parent=5 // pred_fallthru
        _
      %p185 = scmp.lt.s32.totalorder %s12, 2
      // Predicated region
      $region29: #{tpu_custom_call.1} parent=5 // pred_check
        %p186 = pneg %p185
      $region30: #{tpu_custom_call.1} parent=5 // pred_check_branch
        %188 = sbr.rel (%p186) target = $region32
      $region31: #{tpu_custom_call.1} parent=5 // pred_region
        // Predicated region
        $region33: #{tpu_custom_call.1} parent=31 // pred_check
          %p189 = pneg %p32
        $region34: #{tpu_custom_call.1} parent=31 // pred_check_branch
          %191 = sbr.rel (%p189) target = $region36
        $region35: #{tpu_custom_call.1} parent=31 // pred_region
          %p192 = scmp.lt.s32.totalorder %s12, 1
          %s193 = scalar_select %p192, %s12, 1
          %s194 = smul.addr %s193, 8
          %s195 = scalar_lea.vmem %s0, %s194
        $region36: #{tpu_custom_call.1} parent=31 // pred_fallthru
          _
      $region32: #{tpu_custom_call.1} parent=5 // pred_fallthru
        _
      %p196 = scmp.le.s32.totalorder 1, %s12
      %p197 = scmp.lt.s32.totalorder %s12, 3
      %p198 = pnand %p196, %p197
      %p199 = pneg %p198
      // Predicated region
      $region37: #{tpu_custom_call.1} parent=5 // pred_check
        _
      $region38: #{tpu_custom_call.1} parent=5 // pred_check_branch
        %201 = sbr.rel (%p198) target = $region40
      $region39: #{tpu_custom_call.1} parent=5 // pred_region
        %s202 = ssub.s32 %s12, 1
        // Predicated region
        $region41: #{tpu_custom_call.1} parent=39 // pred_check
          %p203 = pneg %p80
        $region42: #{tpu_custom_call.1} parent=39 // pred_check_branch
          %205 = sbr.rel (%p203) target = $region44
        $region43: #{tpu_custom_call.1} parent=39 // pred_region
          %206 = dma.done [#allocation3], 5120
        $region44: #{tpu_custom_call.1} parent=39 // pred_fallthru
          _
        %p207 = scmp.lt.s32.totalorder %s17, 1
        %s208 = scalar_select %p207, %s17, 1
        %s209 = smul.addr %s208, 8
        %s210 = scalar_lea.vmem %s0, %s209
        %p211 = pneg %p38
        %p212 = pneg %p35
        %p213 = pneg %p59
        %p214 = pneg %p56
        %p215 = pneg %p80
        %p216 = pneg %p77
        %p217 = pneg %p101
        %p218 = pneg %p98
        %p219 = pneg %p122
        %p220 = pneg %p119
        %p221 = pneg %p148
        %p222 = pneg %p145
        %p223 = scmp.lt.s32.totalorder %s17, 1
        %s224 = scalar_select %p223, %s17, 1
        %s225 = smul.addr %s224, 8
        %s226 = scalar_lea.vmem %s5, %s225
        %p227 = scmp.lt.s32.totalorder %s17, 1
        %s228 = scalar_select %p227, %s17, 1
        %s229 = smul.addr %s228, 8
        %s230 = scalar_lea.vmem %s0, %s229
        %p231 = scmp.lt.s32.totalorder %s17, 1
        %s232 = scalar_select %p231, %s17, 1
        %s233 = smul.addr %s232, 8
        %s234 = scalar_lea.vmem %s5, %s233
        %v235 = vld [vmem:[%s230] sm:$0xff]
        %v236 = vld [vmem:[%s1] sm:$0xff]
        %v237 = vld [vmem:[%s1 + $0x8] sm:$0xff]
        %v238 = vld [vmem:[%s1 + $0x10] sm:$0xff]
        %v239 = vld [vmem:[%s1 + $0x18] sm:$0xff]
        %v240 = vld [vmem:[%s1 + $0x20] sm:$0xff]
        %v241 = vld [vmem:[%s1 + $0x28] sm:$0xff]
        %v242 = vld [vmem:[%s1 + $0x30] sm:$0xff]
        %v243 = vld [vmem:[%s1 + $0x38] sm:$0xff]
        %v244 = vld [vmem:[%s1 + $0x40] sm:$0xff]
        %v245 = vld [vmem:[%s1 + $0x48] sm:$0xff]
        %v246 = vld [vmem:[%s1 + $0x50] sm:$0xff]
        %v247 = vld [vmem:[%s1 + $0x58] sm:$0xff]
        %v248 = vld [vmem:[%s1 + $0x60] sm:$0xf]
        %v249 = vld [vmem:[%s1 + $0x68] sm:$0xf]
        %v250 = vld [vmem:[%s4] ss:$4 sm:$0x3]
        %v252 = vlaneseq
        %v253 = vshrl.u32 %v252, 7
        %v254 = vsub.s32 0, %v253
        %v255 = vrot.slane %v250, %v254
        %v256 = vlaneseq
        %v257 = vshrl.u32 %v256, 7
        %v258 = vsub.s32 1, %v257
        %v259 = vrot.slane %v250, %v258
        %vm262 = vcmask 424960
        %v264 = vsel %vm262, %v235, 0
        %vm266 = vcmask 1043456
        %v268 = vsel %vm266, %v248, 0
        %v271 = vsel %vm266, %v249, 0
        %273 = vmatprep.subr.mxu0 %v237
        %274 = vmatpush1.msra.mxu0 %v236
        %275 = vmatprep.subr.mxu0 %v239
        %276 = vmatpush1.msra.mxu0 %v238
        %277 = vmatprep.subr.mxu0 %v241
        %278 = vmatpush1.msra.mxu0 %v240
        %279 = vmatprep.subr.mxu0 %v243
        %280 = vmatpush1.msra.mxu0 %v242
        %281 = vmatprep.subr.mxu0 %v245
        %282 = vmatpush1.msra.mxu0 %v244
        %283 = vmatprep.subr.mxu0 %v247
        %284 = vmatpush1.msra.mxu0 %v246
        %285 = vmatprep.subr.mxu0 %v271
        %286 = vmatpush1.msra.mxu0 %v268
        %287 = vmatprep.subr.mxu0 0.0
        %288 = vmatpush1.msra.mxu0 0.0
        %289 = vmatprep.subr.mxu0 0.0
        %290 = vmatpush1.msra.mxu0 0.0
        %291 = vmatprep.subr.mxu0 0.0
        %292 = vmatpush1.msra.mxu0 0.0
        %293 = vmatprep.subr.mxu0 0.0
        %294 = vmatpush1.msra.mxu0 0.0
        %295 = vmatprep.subr.mxu0 0.0
        %296 = vmatpush1.msra.mxu0 0.0
        %297 = vmatprep.subr.mxu0 0.0
        %298 = vmatpush1.msra.mxu0 0.0
        %299 = vmatprep.subr.mxu0 0.0
        %300 = vmatpush1.msra.mxu0 0.0
        %301 = vmatprep.subr.mxu0 0.0
        %302 = vmatpush1.msra.mxu0 0.0
        %303 = vmatprep.subr.mxu0 0.0
        %304 = vmatpush1.msra.mxu0 0.0
        %305 = vmatprep.subr.mxu0 0.0
        %306 = vmatpush1.msra.mxu0 0.0
        %307 = vmatprep.subr.mxu0 0.0
        %308 = vmatpush1.msra.mxu0 0.0
        %309 = vmatprep.subr.mxu0 0.0
        %310 = vmatpush1.msra.mxu0 0.0
        %311 = vmatprep.subr.mxu0 0.0
        %312 = vmatpush1.msra.mxu0 0.0
        %313 = vmatprep.subr.mxu0 0.0
        %314 = vmatpush1.msra.mxu0 0.0
        %315 = vmatprep.subr.mxu0 0.0
        %316 = vmatpush1.msra.mxu0 0.0
        %317 = vmatprep.subr.mxu0 0.0
        %318 = vmatpush1.msra.mxu0 0.0
        %319 = vmatprep.subr.mxu0 0.0
        %320 = vmatpush1.msra.mxu0 0.0
        %321 = vmatprep.subr.mxu0 0.0
        %322 = vmatpush1.msra.mxu0 0.0
        %323 = vmatprep.subr.mxu0 0.0
        %324 = vmatpush1.msra.mxu0 0.0
        %325 = vmatprep.subr.mxu0 0.0
        %326 = vmatpush1.msra.mxu0 0.0
        %327 = vmatprep.subr.mxu0 0.0
        %328 = vmatpush1.msra.mxu0 0.0
        %329 = vmatprep.subr.mxu0 0.0
        %330 = vmatpush1.msra.mxu0 0.0
        %331 = vmatprep.subr.mxu0 0.0
        %332 = vmatpush1.msra.mxu0 0.0
        %333 = vmatprep.subr.mxu0 0.0
        %334 = vmatpush1.msra.mxu0 0.0
        %335 = vmatprep.subr.mxu0 0.0
        %336 = vmatpush1.msra.mxu0 0.0
        %337 = vmatprep.mubr.f32.mxu0 0.0
        %338 = vmatmul.mubr.f32.gmra.mrb[0].mxu0 %v264
        %v339 = vpop.f32.mrb[0].mxu0
        %v340 = vadd.f32 %v255, %v339
        %v341 = vpop.f32.mrb[0].mxu0
        %v342 = vadd.f32 %v259, %v341
        %343 = vdwg.mxu0
        %v344 = vtanh.pop %v340
        %v345 = vtanh.pop %v342
        %v346 = vld [vmem:[#allocation2] sm:$0xff]
        %v347 = vld [vmem:[#allocation2 + $0x8] sm:$0xff]
        %v348 = vld [vmem:[#allocation2 + $0x10] sm:$0xff]
        %v349 = vld [vmem:[#allocation2 + $0x18] sm:$0xff]
        %v350 = vld [vmem:[#allocation2 + $0x20] sm:$0xff]
        %v351 = vld [vmem:[#allocation2 + $0x28] sm:$0xff]
        %v352 = vld [vmem:[#allocation2 + $0x30] sm:$0xff]
        %v353 = vld [vmem:[#allocation2 + $0x38] sm:$0xff]
        %v354 = vld [vmem:[#allocation2 + $0x40] sm:$0xff]
        %v355 = vld [vmem:[#allocation2 + $0x48] sm:$0xff]
        %v356 = vld [vmem:[#allocation2 + $0x50] sm:$0xff]
        %v357 = vld [vmem:[#allocation2 + $0x58] sm:$0xff]
        %v358 = vld [vmem:[#allocation2 + $0x60] sm:$0xff]
        %v359 = vld [vmem:[#allocation2 + $0x68] sm:$0xff]
        %v360 = vld [vmem:[#allocation2 + $0x70] sm:$0xff]
        %v361 = vld [vmem:[#allocation2 + $0x78] sm:$0xff]
        %v362 = vld [vmem:[#allocation2 + $0x80] sm:$0xff]
        %v363 = vld [vmem:[#allocation2 + $0x88] sm:$0xff]
        %v364 = vld [vmem:[#allocation2 + $0x90] sm:$0xff]
        %v365 = vld [vmem:[#allocation2 + $0x98] sm:$0xff]
        %v366 = vld [vmem:[#allocation2 + $0xa0] sm:$0xff]
        %v367 = vld [vmem:[#allocation2 + $0xa8] sm:$0xff]
        %v368 = vld [vmem:[#allocation2 + $0xb0] sm:$0xff]
        %v369 = vld [vmem:[#allocation2 + $0xb8] sm:$0xff]
        %v370 = vld [vmem:[#allocation2 + $0xc0] sm:$0xff]
        %v371 = vld [vmem:[#allocation2 + $0xc8] sm:$0xff]
        %v372 = vld [vmem:[#allocation2 + $0xd0] sm:$0xff]
        %v373 = vld [vmem:[#allocation2 + $0xd8] sm:$0xff]
        %v374 = vld [vmem:[#allocation2 + $0xe0] sm:$0xff]
        %v375 = vld [vmem:[#allocation2 + $0xe8] sm:$0xff]
        %v376 = vld [vmem:[#allocation2 + $0xf0] sm:$0xff]
        %v377 = vld [vmem:[#allocation2 + $0xf8] sm:$0xff]
        %v378 = vld [vmem:[#allocation2 + $0x100] sm:$0xff]
        %v379 = vld [vmem:[#allocation2 + $0x108] sm:$0xff]
        %v380 = vld [vmem:[#allocation2 + $0x110] sm:$0xff]
        %v381 = vld [vmem:[#allocation2 + $0x118] sm:$0xff]
        %v382 = vld [vmem:[#allocation2 + $0x120] sm:$0xff]
        %v383 = vld [vmem:[#allocation2 + $0x128] sm:$0xff]
        %v384 = vld [vmem:[#allocation2 + $0x130] sm:$0xff]
        %v385 = vld [vmem:[#allocation2 + $0x138] sm:$0xff]
        %s386 = scalar_lea.vmem %s4, 1
        %v387 = vld [vmem:[%s386] ss:$4 sm:$0x3]
        %v389 = vlaneseq
        %v390 = vshrl.u32 %v389, 7
        %v391 = vsub.s32 0, %v390
        %v392 = vrot.slane %v387, %v391
        %v393 = vlaneseq
        %v394 = vshrl.u32 %v393, 7
        %v395 = vsub.s32 1, %v394
        %v396 = vrot.slane %v387, %v395
        %vm399 = vcmask 261120
        %v401 = vsel %vm399, %v345, 0
        %403 = vmatprep.subr.mxu0 %v347
        %404 = vmatpush1.msra.mxu0 %v346
        %405 = vmatprep.subr.mxu0 %v349
        %406 = vmatpush1.msra.mxu0 %v348
        %407 = vmatprep.subr.mxu0 %v351
        %408 = vmatpush1.msra.mxu0 %v350
        %409 = vmatprep.subr.mxu0 %v353
        %410 = vmatpush1.msra.mxu0 %v352
        %411 = vmatprep.subr.mxu0 %v355
        %412 = vmatpush1.msra.mxu0 %v354
        %413 = vmatprep.subr.mxu0 %v357
        %414 = vmatpush1.msra.mxu0 %v356
        %415 = vmatprep.subr.mxu0 %v359
        %416 = vmatpush1.msra.mxu0 %v358
        %417 = vmatprep.subr.mxu0 %v361
        %418 = vmatpush1.msra.mxu0 %v360
        %419 = vmatprep.subr.mxu0 %v363
        %420 = vmatpush1.msra.mxu0 %v362
        %421 = vmatprep.subr.mxu0 %v365
        %422 = vmatpush1.msra.mxu0 %v364
        %423 = vmatprep.subr.mxu0 %v367
        %424 = vmatpush1.msra.mxu0 %v366
        %425 = vmatprep.subr.mxu0 %v369
        %426 = vmatpush1.msra.mxu0 %v368
        %427 = vmatprep.subr.mxu0 %v371
        %428 = vmatpush1.msra.mxu0 %v370
        %429 = vmatprep.subr.mxu0 %v373
        %430 = vmatpush1.msra.mxu0 %v372
        %431 = vmatprep.subr.mxu0 %v375
        %432 = vmatpush1.msra.mxu0 %v374
        %433 = vmatprep.subr.mxu0 %v377
        %434 = vmatpush1.msra.mxu0 %v376
        %435 = vmatprep.subr.mxu0 %v379
        %436 = vmatpush1.msra.mxu0 %v378
        %437 = vmatprep.subr.mxu0 %v381
        %438 = vmatpush1.msra.mxu0 %v380
        %439 = vmatprep.subr.mxu0 %v383
        %440 = vmatpush1.msra.mxu0 %v382
        %441 = vmatprep.subr.mxu0 %v385
        %442 = vmatpush1.msra.mxu0 %v384
        %443 = vmatprep.subr.mxu0 0.0
        %444 = vmatpush1.msra.mxu0 0.0
        %445 = vmatprep.subr.mxu0 0.0
        %446 = vmatpush1.msra.mxu0 0.0
        %447 = vmatprep.subr.mxu0 0.0
        %448 = vmatpush1.msra.mxu0 0.0
        %449 = vmatprep.subr.mxu0 0.0
        %450 = vmatpush1.msra.mxu0 0.0
        %451 = vmatprep.subr.mxu0 0.0
        %452 = vmatpush1.msra.mxu0 0.0
        %453 = vmatprep.subr.mxu0 0.0
        %454 = vmatpush1.msra.mxu0 0.0
        %455 = vmatprep.subr.mxu0 0.0
        %456 = vmatpush1.msra.mxu0 0.0
        %457 = vmatprep.subr.mxu0 0.0
        %458 = vmatpush1.msra.mxu0 0.0
        %459 = vmatprep.subr.mxu0 0.0
        %460 = vmatpush1.msra.mxu0 0.0
        %461 = vmatprep.subr.mxu0 0.0
        %462 = vmatpush1.msra.mxu0 0.0
        %463 = vmatprep.subr.mxu0 0.0
        %464 = vmatpush1.msra.mxu0 0.0
        %465 = vmatprep.subr.mxu0 0.0
        %466 = vmatpush1.msra.mxu0 0.0
        %467 = vmatprep.mubr.f32.mxu0 %v401
        %468 = vmatmul.mubr.f32.gmra.mrb[0].mxu0 %v344
        %v469 = vpop.f32.mrb[0].mxu0
        %v470 = vadd.f32 %v392, %v469
        %v471 = vpop.f32.mrb[0].mxu0
        %v472 = vadd.f32 %v396, %v471
        %473 = vdwg.mxu0
        %v474 = vtanh.pop %v470
        %v475 = vtanh.pop %v472
        %v476 = vld [vmem:[%s3] sm:$0xff]
        %v477 = vld [vmem:[%s3 + $0x8] sm:$0xff]
        %v478 = vld [vmem:[%s3 + $0x10] sm:$0xff]
        %v479 = vld [vmem:[%s3 + $0x18] sm:$0xff]
        %v480 = vld [vmem:[%s3 + $0x20] sm:$0xff]
        %v481 = vld [vmem:[%s3 + $0x28] sm:$0xff]
        %v482 = vld [vmem:[%s3 + $0x30] sm:$0xff]
        %v483 = vld [vmem:[%s3 + $0x38] sm:$0xff]
        %v484 = vld [vmem:[%s3 + $0x40] sm:$0xff]
        %v485 = vld [vmem:[%s3 + $0x48] sm:$0xff]
        %v486 = vld [vmem:[%s3 + $0x50] sm:$0xff]
        %v487 = vld [vmem:[%s3 + $0x58] sm:$0xff]
        %v488 = vld [vmem:[%s3 + $0x60] sm:$0xff]
        %v489 = vld [vmem:[%s3 + $0x68] sm:$0xff]
        %v490 = vld [vmem:[%s3 + $0x70] sm:$0xff]
        %v491 = vld [vmem:[%s3 + $0x78] sm:$0xff]
        %v492 = vld [vmem:[%s3 + $0x80] sm:$0xff]
        %v493 = vld [vmem:[%s3 + $0x88] sm:$0xff]
        %v494 = vld [vmem:[%s3 + $0x90] sm:$0xff]
        %v495 = vld [vmem:[%s3 + $0x98] sm:$0xff]
        %v496 = vld [vmem:[%s4 + $0x2] sm:$0x1]
        %v497 = vlaneseq
        %v498 = vshrl.u32 %v497, 7
        %v499 = vsub.s32 0, %v498
        %v500 = vrot.slane %v496, %v499
        %v502 = vsel %vm399, %v475, 0
        %504 = vmatprep.subr.mxu0 0.0
        %505 = vmatpush1.msra.mxu0 %v476
        %506 = vmatprep.subr.mxu0 0.0
        %507 = vmatpush1.msra.mxu0 %v477
        %508 = vmatprep.subr.mxu0 0.0
        %509 = vmatpush1.msra.mxu0 %v478
        %510 = vmatprep.subr.mxu0 0.0
        %511 = vmatpush1.msra.mxu0 %v479
        %512 = vmatprep.subr.mxu0 0.0
        %513 = vmatpush1.msra.mxu0 %v480
        %514 = vmatprep.subr.mxu0 0.0
        %515 = vmatpush1.msra.mxu0 %v481
        %516 = vmatprep.subr.mxu0 0.0
        %517 = vmatpush1.msra.mxu0 %v482
        %518 = vmatprep.subr.mxu0 0.0
        %519 = vmatpush1.msra.mxu0 %v483
        %520 = vmatprep.subr.mxu0 0.0
        %521 = vmatpush1.msra.mxu0 %v484
        %522 = vmatprep.subr.mxu0 0.0
        %523 = vmatpush1.msra.mxu0 %v485
        %524 = vmatprep.subr.mxu0 0.0
        %525 = vmatpush1.msra.mxu0 %v486
        %526 = vmatprep.subr.mxu0 0.0
        %527 = vmatpush1.msra.mxu0 %v487
        %528 = vmatprep.subr.mxu0 0.0
        %529 = vmatpush1.msra.mxu0 %v488
        %530 = vmatprep.subr.mxu0 0.0
        %531 = vmatpush1.msra.mxu0 %v489
        %532 = vmatprep.subr.mxu0 0.0
        %533 = vmatpush1.msra.mxu0 %v490
        %534 = vmatprep.subr.mxu0 0.0
        %535 = vmatpush1.msra.mxu0 %v491
        %536 = vmatprep.subr.mxu0 0.0
        %537 = vmatpush1.msra.mxu0 %v492
        %538 = vmatprep.subr.mxu0 0.0
        %539 = vmatpush1.msra.mxu0 %v493
        %540 = vmatprep.subr.mxu0 0.0
        %541 = vmatpush1.msra.mxu0 %v494
        %542 = vmatprep.subr.mxu0 0.0
        %543 = vmatpush1.msra.mxu0 %v495
        %544 = vmatprep.subr.mxu0 0.0
        %545 = vmatpush1.msra.mxu0 0.0
        %546 = vmatprep.subr.mxu0 0.0
        %547 = vmatpush1.msra.mxu0 0.0
        %548 = vmatprep.subr.mxu0 0.0
        %549 = vmatpush1.msra.mxu0 0.0
        %550 = vmatprep.subr.mxu0 0.0
        %551 = vmatpush1.msra.mxu0 0.0
        %552 = vmatprep.subr.mxu0 0.0
        %553 = vmatpush1.msra.mxu0 0.0
        %554 = vmatprep.subr.mxu0 0.0
        %555 = vmatpush1.msra.mxu0 0.0
        %556 = vmatprep.subr.mxu0 0.0
        %557 = vmatpush1.msra.mxu0 0.0
        %558 = vmatprep.subr.mxu0 0.0
        %559 = vmatpush1.msra.mxu0 0.0
        %560 = vmatprep.subr.mxu0 0.0
        %561 = vmatpush1.msra.mxu0 0.0
        %562 = vmatprep.subr.mxu0 0.0
        %563 = vmatpush1.msra.mxu0 0.0
        %564 = vmatprep.subr.mxu0 0.0
        %565 = vmatpush1.msra.mxu0 0.0
        %566 = vmatprep.subr.mxu0 0.0
        %567 = vmatpush1.msra.mxu0 0.0
        %568 = vmatprep.mubr.f32.mxu0 %v502
        %569 = vmatmul.mubr.f32.gmra.mrb[0].mxu0 %v474
        %v570 = vpop.f32.mrb[0].mxu0
        %v571 = vadd.f32 %v500, %v570
        %v572 = vpop.f32.mrb[0].mxu0
        %573 = vdwg.mxu0
        %vm574 = vcmask 31744
        %v575 = vsel %vm574, %v571, -inf
        %576 = vmax.xlane.f32.xlu0 %v575
        %v577 = vpop.xlane.xlu0 %576
        %v578 = vsub.f32 %v571, %v577
        %v579 = vmul.f32 %v578, 1.442695
        %v580 = vpow.pop %v579
        %v581 = vsel %vm574, %v580, 0.0
        %582 = vadd.xlane.f32.xlu0 %v581
        %v583 = vpop.xlane.xlu0 %582
        %v584 = vrcp.pop %v583
        %v585 = vmul.f32 %v580, %v584
        %587 = vset.pattern.permute.xlu0 0
        %588 = vperm.xlu0 %587, %v585
        %v589 = vpop.permute.xlu0 %588
        %v591 = vmul.f32 %v571, %v589
        %592 = vset.pattern.permute.xlu0 1
        %593 = vperm.xlu0 %592, %v585
        %v594 = vpop.permute.xlu0 %593
        %v596 = vmul.f32 %v571, %v594
        %598 = vrot.lane.b32.xlu0 %v596, 120
        %v599 = vpop.permute.xlu0 %598
        %v601 = vadd.f32 %v591, %v599
        %602 = vset.pattern.permute.xlu0 2
        %603 = vperm.xlu0 %602, %v585
        %v604 = vpop.permute.xlu0 %603
        %v606 = vmul.f32 %v571, %v604
        %608 = vrot.lane.b32.xlu0 %v606, 112
        %v609 = vpop.permute.xlu0 %608
        %v611 = vadd.f32 %v601, %v609
        %612 = vset.pattern.permute.xlu0 3
        %613 = vperm.xlu0 %612, %v585
        %v614 = vpop.permute.xlu0 %613
        %v616 = vmul.f32 %v571, %v614
        %618 = vrot.lane.b32.xlu0 %v616, 104
        %v619 = vpop.permute.xlu0 %618
        %v621 = vadd.f32 %v611, %v619
        %623 = vrot.lane.b32.xlu0 %v621, 124
        %v624 = vpop.permute.xlu0 %623
        %vm626 = vcmask 64512
        %627 = vst.msk [vmem:[%s234] sm:$0xff] %vm626, %v624
        %p628 = scmp.lt.s32.totalorder %s17, 1
        %s629 = scalar_select %p628, %s17, 1
        %s630 = smul.addr %s629, 8
        %s631 = scalar_lea.vmem %s5, %s630
        // Predicated region
        $region45: #{tpu_custom_call.1} parent=39 // pred_check
          %p632 = pneg %p145
        $region46: #{tpu_custom_call.1} parent=39 // pred_check_branch
          %634 = sbr.rel (%p632) target = $region48
        $region47: #{tpu_custom_call.1} parent=39 // pred_region
          _
        $region48: #{tpu_custom_call.1} parent=39 // pred_fallthru
          _
      $region40: #{tpu_custom_call.1} parent=5 // pred_fallthru
        _
      %p635 = scmp.le.s32.totalorder 2, %s12
      // Predicated region
      $region49: #{tpu_custom_call.1} parent=5 // pred_check
        %p636 = pneg %p635
      $region50: #{tpu_custom_call.1} parent=5 // pred_check_branch
        %638 = sbr.rel (%p636) target = $region52
      $region51: #{tpu_custom_call.1} parent=5 // pred_region
        %s639 = ssub.s32 %s12, 2
        // Predicated region
        $region53: #{tpu_custom_call.1} parent=51 // pred_check
          %p640 = pneg %p151
        $region54: #{tpu_custom_call.1} parent=51 // pred_check_branch
          %642 = sbr.rel (%p640) target = $region56
        $region55: #{tpu_custom_call.1} parent=51 // pred_region
          %p643 = scmp.lt.s32.totalorder %s18, 1
          %s644 = scalar_select %p643, %s18, 1
          %s645 = smul.addr %s644, 8
          %s646 = scalar_lea.vmem %s5, %s645
        $region56: #{tpu_custom_call.1} parent=51 // pred_fallthru
          _
      $region52: #{tpu_custom_call.1} parent=5 // pred_fallthru
        _
    $region6: #{tpu_custom_call.1} parent=1 // loop_footer
      %s16 = sadd.s32 1, %s12
    $region7: #{tpu_custom_call.1} parent=1 // loop_footer_branch
      %11 = sbr.rel target = $region3
    $region8: #{tpu_custom_call.1} parent=1 // loop_exit
      _
    %647 = vsyncpa [#allocation3], 1
    %s648 = scalar_lea.sflag [#allocation3], 1
    %649 = vsyncpa %s648, 1

</llo_original>
